<compile_context>
chip_gen: v7x
topology: tpu7x:2x2x1
jax: 0.10.0
libtpu: 0.0.40
codegen_flags: <defaults>
</compile_context>

<pallas_src>
import functools
import math

import jax
import jax.numpy as jnp
from jax.experimental import pallas as pl
from jax.experimental.pallas import tpu as pltpu


def _round_up(x, m):
    return (x + m - 1) // m * m


def _cdc_kernel(Wp, Q_pad, C_in_pad, NB, x_ref, w_ref, o_ref, xs_ref):
    """Central-difference conv, NB batch elements per grid step.

    x_ref:  (NB, C_in_pad, S_pad)   bf16 padded image, spatial dims flattened
    w_ref:  (C_out, 9*C_in_pad)     bf16 theta-folded per-tap weights
    o_ref:  (NB, C_out, Q_pad)      f32,  Q_pad = round_up(H*Wp, 128)
    xs_ref: (9*C_in_pad, NB*Q_pad)  bf16 VMEM scratch, taps stacked on K axis
    """
    # Stack the 9 constant-offset tap slices along the contraction axis
    # (each shifted slice is relaid out exactly once, into the scratch).
    for b in range(NB):
        for kh in range(3):
            for kw in range(3):
                t = kh * 3 + kw
                off = kh * Wp + kw                       # static lane offset
                xs_ref[t * C_in_pad:(t + 1) * C_in_pad,
                       b * Q_pad:(b + 1) * Q_pad] = x_ref[b, :, off:off + Q_pad]

    # One big MXU matmul, f32 accumulation.
    res = jnp.dot(w_ref[...], xs_ref[...], preferred_element_type=jnp.float32)

    for b in range(NB):
        o_ref[b] = res[:, b * Q_pad:(b + 1) * Q_pad].astype(o_ref.dtype)


def conv2d_cd(x, weight, theta=0.7):
    """x: (N, C_in, H, W) float32 NCHW. weight: (C_out, C_in, 3, 3) float32.

    stride=1, padding=1, dilation=1, groups=1, bias=False (module defaults).
    Returns (N, C_out, H, W) float32.
    """
    N, C_in, H, W = x.shape
    C_out, C_in_w, KH, KW = weight.shape
    assert C_in == C_in_w and KH == 3 and KW == 3

    Hp, Wp = H + 2, W + 2
    S = Hp * Wp                                  # flattened padded spatial size
    Q = H * Wp                                   # flattened output positions
    Q_pad = _round_up(Q, 128)                    # lane-dense output stores
    S_pad = _round_up(Q_pad + 2 * Wp + 2, 128)   # covers the largest tap slice
    C_in_pad = _round_up(C_in, 8)                # sublane-aligned scratch writes
    K = 9 * C_in_pad

    # ---- fold the diff conv (theta) into the centre tap of the 3x3 weight --
    if math.fabs(theta - 0.0) < 1e-8:
        w_eff = weight
    else:
        w_sum = weight.sum(axis=(2, 3))                          # (C_out, C_in)
        w_eff = weight.at[:, :, 1, 1].add(-theta * w_sum)
    w_eff = jnp.pad(w_eff, ((0, 0), (0, C_in_pad - C_in), (0, 0), (0, 0)))
    # (C_out, C_in_pad, 3, 3) -> (C_out, kh, kw, C_in_pad) -> (C_out, 9*C_in_pad)
    # so column (kh*3+kw)*C_in_pad + i matches scratch row layout in the kernel.
    w_mat = jnp.transpose(w_eff, (0, 2, 3, 1)).reshape(C_out, K)
    w_mat = w_mat.astype(jnp.bfloat16)

    # ---- pad once (+1 halo, channels to C_in_pad), flatten, zero-extend ----
    # TODO(synk): fold this pad and the final column-drop into the kernel
    # (memory_space=pl.ANY + manual make_async_copy into a zeroed scratch) to
    # cut the extra input/output HBM round trips for memory-bound shapes.
    xp = jnp.pad(x, ((0, 0), (0, C_in_pad - C_in), (1, 1), (1, 1)))
    x_flat = jnp.pad(xp.reshape(N, C_in_pad, S), ((0, 0), (0, 0), (0, S_pad - S)))
    x_flat = x_flat.astype(jnp.bfloat16)

    # ---- pick how many images per grid step (amortize per-step overhead) ---
    per_img = (2 * C_in_pad * S_pad * 2          # double-buffered bf16 input
               + 2 * C_out * Q_pad * 4           # double-buffered f32 output
               + K * Q_pad * 2)                  # scratch share
    budget = 16 * 1024 * 1024
    max_nb = min(8, max(1, N // 2))              # keep >=2 steps for v7x's 2 TCs
    NB = 1
    for cand in range(1, max_nb + 1):
        if N % cand == 0 and cand * per_img <= budget:
            NB = cand
    grid = (N // NB,)

    need = (2 * NB * C_in_pad * S_pad * 2 + 2 * NB * C_out * Q_pad * 4
            + 2 * C_out * K * 2 + K * NB * Q_pad * 2)
    vmem_limit = int(min(max(2 * need, 32 * 1024 * 1024), 112 * 1024 * 1024))

    cost = pl.CostEstimate(
        flops=2 * N * C_out * K * Q_pad,
        transcendentals=0,
        bytes_accessed=(N * C_in_pad * S_pad * 2 + C_out * K * 2
                        + N * C_out * Q_pad * 4),
    )

    # TODO(synk): for large H*W with many channels (e.g. 64x224x224 on v7x's
    # 64 MiB VMEM), add a grid axis over output-row tiles with a 2-row halo
    # instead of one whole image per block.
    out_flat = pl.pallas_call(
        functools.partial(_cdc_kernel, Wp, Q_pad, C_in_pad, NB),
        out_shape=jax.ShapeDtypeStruct((N, C_out, Q_pad), jnp.float32),
        grid_spec=pltpu.PrefetchScalarGridSpec(
            num_scalar_prefetch=0,
            grid=grid,
            in_specs=[
                pl.BlockSpec((NB, C_in_pad, S_pad), lambda n: (n, 0, 0)),
                pl.BlockSpec((C_out, K), lambda n: (0, 0)),
            ],
            out_specs=pl.BlockSpec((NB, C_out, Q_pad), lambda n: (n, 0, 0)),
            scratch_shapes=[pltpu.VMEM((K, NB * Q_pad), jnp.bfloat16)],
        ),
        compiler_params=pltpu.CompilerParams(
            dimension_semantics=("parallel",),
            vmem_limit_bytes=vmem_limit),
        cost_estimate=cost,
    )(x_flat, w_mat)

    # (N, C_out, Q_pad) -> drop lane padding -> (N, C_out, H, Wp) -> drop the
    # two padded columns per row -> NCHW.
    return out_flat[:, :, :Q].reshape(N, C_out, H, Wp)[:, :, :, :W]


def _reference(x, weight, theta):
    """Pure-JAX f32 reference mirroring the PyTorch forward (NCHW)."""
    dn = jax.lax.conv_dimension_numbers(x.shape, weight.shape,
                                        ("NCHW", "OIHW", "NCHW"))
    out_normal = jax.lax.conv_general_dilated(
        x, weight, window_strides=(1, 1), padding=((1, 1), (1, 1)),
        dimension_numbers=dn)
    if math.fabs(theta - 0.0) < 1e-8:
        return out_normal
    kernel_diff = weight.sum(axis=(2, 3))[:, :, None, None]
    out_diff = jax.lax.conv_general_dilated(
        x, kernel_diff, window_strides=(1, 1), padding=((0, 0), (0, 0)),
        dimension_numbers=dn)
    return out_normal - theta * out_diff


if __name__ == "__main__":
    key = jax.random.PRNGKey(0)
    kx, kw = jax.random.split(key)

    N, C_in, H, W = 2, 4, 16, 16
    C_out, ksize = 8, 3
    theta = 0.7

    x = jax.random.normal(kx, (N, C_in, H, W), dtype=jnp.float32)
    # deterministic Kaiming-uniform-like init for the conv weight
    fan_in = C_in * ksize * ksize
    bound = 1.0 / math.sqrt(fan_in)
    weight = jax.random.uniform(kw, (C_out, C_in, ksize, ksize),
                                dtype=jnp.float32, minval=-bound, maxval=bound)

    out = conv2d_cd(x, weight, theta)
    out = jax.block_until_ready(out)

    ref = _reference(x, weight, theta)
    assert out.shape == (N, C_out, H, W)
    # bf16 operands (f32 accumulation) -> looser tolerance vs the f32 reference.
    assert jnp.max(jnp.abs(out - ref)) < 3e-2

    print("KERNEL_OK")
</pallas_src>

<mosaic_0001>
module attributes {stable_mosaic.version = 11 : i64} {
  func.func @_cdc_kernel(%arg0: i32, %arg1: memref<1x8x512xbf16, #tpu.memory_space<vmem>>, %arg2: memref<8x72xbf16, #tpu.memory_space<vmem>>, %arg3: memref<1x8x384xf32, #tpu.memory_space<vmem>>, %arg4: memref<72x384xbf16, #tpu.memory_space<vmem>>) attributes {dimension_semantics = [#tpu.dimension_semantics<parallel>], iteration_bounds = array<i64: 2>, scalar_prefetch = 0 : i64, scratch_operands = 1 : i64, tpu.core_type = #tpu.core_type<tc>, window_params = [{transform_indices = @transform_0, window_bounds = array<i64: 1, 8, 512>}, {pipeline_mode = #tpu.pipeline_mode<synchronous>, transform_indices = @transform_1, window_bounds = array<i64: 8, 72>}, {transform_indices = @transform_2, window_bounds = array<i64: 1, 8, 384>}]} {
    %c0 = arith.constant 0 : index
    %c0_0 = arith.constant 0 : index
    %c0_1 = arith.constant 0 : index
    %0 = vector.load %arg1[%c0, %c0_0, %c0_1] : memref<1x8x512xbf16, #tpu.memory_space<vmem>>, vector<1x8x384xbf16>
    %1 = vector.shape_cast %0 : vector<1x8x384xbf16> to vector<8x384xbf16>
    %c0_2 = arith.constant 0 : index
    %c0_3 = arith.constant 0 : index
    %2 = vector.load %arg4[%c0_2, %c0_3] : memref<72x384xbf16, #tpu.memory_space<vmem>>, vector<8x384xbf16>
    tpu.vector_store %arg4[%c0_2, %c0_3], %1 {strides = array<i32>} : memref<72x384xbf16, #tpu.memory_space<vmem>>, vector<8x384xbf16>,
    %c0_4 = arith.constant 0 : index
    %c0_5 = arith.constant 0 : index
    %c1 = arith.constant 1 : index
    %3 = vector.load %arg1[%c0_4, %c0_5, %c1] : memref<1x8x512xbf16, #tpu.memory_space<vmem>>, vector<1x8x384xbf16>
    %4 = vector.shape_cast %3 : vector<1x8x384xbf16> to vector<8x384xbf16>
    %c8 = arith.constant 8 : index
    %c0_6 = arith.constant 0 : index
    %5 = vector.load %arg4[%c8, %c0_6] : memref<72x384xbf16, #tpu.memory_space<vmem>>, vector<8x384xbf16>
    tpu.vector_store %arg4[%c8, %c0_6], %4 {strides = array<i32>} : memref<72x384xbf16, #tpu.memory_space<vmem>>, vector<8x384xbf16>,
    %c0_7 = arith.constant 0 : index
    %c0_8 = arith.constant 0 : index
    %c2 = arith.constant 2 : index
    %6 = vector.load %arg1[%c0_7, %c0_8, %c2] : memref<1x8x512xbf16, #tpu.memory_space<vmem>>, vector<1x8x384xbf16>
    %7 = vector.shape_cast %6 : vector<1x8x384xbf16> to vector<8x384xbf16>
    %c16 = arith.constant 16 : index
    %c0_9 = arith.constant 0 : index
    %8 = vector.load %arg4[%c16, %c0_9] : memref<72x384xbf16, #tpu.memory_space<vmem>>, vector<8x384xbf16>
    tpu.vector_store %arg4[%c16, %c0_9], %7 {strides = array<i32>} : memref<72x384xbf16, #tpu.memory_space<vmem>>, vector<8x384xbf16>,
    %c0_10 = arith.constant 0 : index
    %c0_11 = arith.constant 0 : index
    %c18 = arith.constant 18 : index
    %9 = vector.load %arg1[%c0_10, %c0_11, %c18] : memref<1x8x512xbf16, #tpu.memory_space<vmem>>, vector<1x8x384xbf16>
    %10 = vector.shape_cast %9 : vector<1x8x384xbf16> to vector<8x384xbf16>
    %c24 = arith.constant 24 : index
    %c0_12 = arith.constant 0 : index
    %11 = vector.load %arg4[%c24, %c0_12] : memref<72x384xbf16, #tpu.memory_space<vmem>>, vector<8x384xbf16>
    tpu.vector_store %arg4[%c24, %c0_12], %10 {strides = array<i32>} : memref<72x384xbf16, #tpu.memory_space<vmem>>, vector<8x384xbf16>,
    %c0_13 = arith.constant 0 : index
    %c0_14 = arith.constant 0 : index
    %c19 = arith.constant 19 : index
    %12 = vector.load %arg1[%c0_13, %c0_14, %c19] : memref<1x8x512xbf16, #tpu.memory_space<vmem>>, vector<1x8x384xbf16>
    %13 = vector.shape_cast %12 : vector<1x8x384xbf16> to vector<8x384xbf16>
    %c32 = arith.constant 32 : index
    %c0_15 = arith.constant 0 : index
    %14 = vector.load %arg4[%c32, %c0_15] : memref<72x384xbf16, #tpu.memory_space<vmem>>, vector<8x384xbf16>
    tpu.vector_store %arg4[%c32, %c0_15], %13 {strides = array<i32>} : memref<72x384xbf16, #tpu.memory_space<vmem>>, vector<8x384xbf16>,
    %c0_16 = arith.constant 0 : index
    %c0_17 = arith.constant 0 : index
    %c20 = arith.constant 20 : index
    %15 = vector.load %arg1[%c0_16, %c0_17, %c20] : memref<1x8x512xbf16, #tpu.memory_space<vmem>>, vector<1x8x384xbf16>
    %16 = vector.shape_cast %15 : vector<1x8x384xbf16> to vector<8x384xbf16>
    %c40 = arith.constant 40 : index
    %c0_18 = arith.constant 0 : index
    %17 = vector.load %arg4[%c40, %c0_18] : memref<72x384xbf16, #tpu.memory_space<vmem>>, vector<8x384xbf16>
    tpu.vector_store %arg4[%c40, %c0_18], %16 {strides = array<i32>} : memref<72x384xbf16, #tpu.memory_space<vmem>>, vector<8x384xbf16>,
    %c0_19 = arith.constant 0 : index
    %c0_20 = arith.constant 0 : index
    %c36 = arith.constant 36 : index
    %18 = vector.load %arg1[%c0_19, %c0_20, %c36] : memref<1x8x512xbf16, #tpu.memory_space<vmem>>, vector<1x8x384xbf16>
    %19 = vector.shape_cast %18 : vector<1x8x384xbf16> to vector<8x384xbf16>
    %c48 = arith.constant 48 : index
    %c0_21 = arith.constant 0 : index
    %20 = vector.load %arg4[%c48, %c0_21] : memref<72x384xbf16, #tpu.memory_space<vmem>>, vector<8x384xbf16>
    tpu.vector_store %arg4[%c48, %c0_21], %19 {strides = array<i32>} : memref<72x384xbf16, #tpu.memory_space<vmem>>, vector<8x384xbf16>,
    %c0_22 = arith.constant 0 : index
    %c0_23 = arith.constant 0 : index
    %c37 = arith.constant 37 : index
    %21 = vector.load %arg1[%c0_22, %c0_23, %c37] : memref<1x8x512xbf16, #tpu.memory_space<vmem>>, vector<1x8x384xbf16>
    %22 = vector.shape_cast %21 : vector<1x8x384xbf16> to vector<8x384xbf16>
    %c56 = arith.constant 56 : index
    %c0_24 = arith.constant 0 : index
    %23 = vector.load %arg4[%c56, %c0_24] : memref<72x384xbf16, #tpu.memory_space<vmem>>, vector<8x384xbf16>
    tpu.vector_store %arg4[%c56, %c0_24], %22 {strides = array<i32>} : memref<72x384xbf16, #tpu.memory_space<vmem>>, vector<8x384xbf16>,
    %c0_25 = arith.constant 0 : index
    %c0_26 = arith.constant 0 : index
    %c38 = arith.constant 38 : index
    %24 = vector.load %arg1[%c0_25, %c0_26, %c38] : memref<1x8x512xbf16, #tpu.memory_space<vmem>>, vector<1x8x384xbf16>
    %25 = vector.shape_cast %24 : vector<1x8x384xbf16> to vector<8x384xbf16>
    %c64 = arith.constant 64 : index
    %c0_27 = arith.constant 0 : index
    %26 = vector.load %arg4[%c64, %c0_27] : memref<72x384xbf16, #tpu.memory_space<vmem>>, vector<8x384xbf16>
    tpu.vector_store %arg4[%c64, %c0_27], %25 {strides = array<i32>} : memref<72x384xbf16, #tpu.memory_space<vmem>>, vector<8x384xbf16>,
    %c0_28 = arith.constant 0 : index
    %c0_29 = arith.constant 0 : index
    %27 = vector.load %arg2[%c0_28, %c0_29] : memref<8x72xbf16, #tpu.memory_space<vmem>>, vector<8x72xbf16>
    %c0_30 = arith.constant 0 : index
    %c0_31 = arith.constant 0 : index
    %28 = vector.load %arg4[%c0_30, %c0_31] : memref<72x384xbf16, #tpu.memory_space<vmem>>, vector<72x384xbf16>
    %cst = arith.constant dense<0.000000e+00> : vector<8x384xf32>
    %29 = tpu.matmul %27, %28, %cst {dimension_numbers = #tpu.dot_dimension_numbers<[1], [0], [0], [1], [0, 0, 1, 1], [], []>} : vector<8x72xbf16>, vector<72x384xbf16>, vector<8x384xf32> -> vector<8x384xf32>
    %c0_32 = arith.constant 0 : index
    %c0_33 = arith.constant 0 : index
    %c0_34 = arith.constant 0 : index
    %30 = vector.load %arg3[%c0_32, %c0_33, %c0_34] : memref<1x8x384xf32, #tpu.memory_space<vmem>>, vector<1x8x384xf32>
    %31 = vector.shape_cast %30 : vector<1x8x384xf32> to vector<8x384xf32>
    %32 = vector.shape_cast %29 : vector<8x384xf32> to vector<1x8x384xf32>
    tpu.vector_store %arg3[%c0_32, %c0_33, %c0_34], %32 {strides = array<i32>} : memref<1x8x384xf32, #tpu.memory_space<vmem>>, vector<1x8x384xf32>,
    return
  }
  func.func @transform_0(%arg0: i32) -> (i32, i32, i32) {
    %c0_i32 = arith.constant 0 : i32
    %c0_i32_0 = arith.constant 0 : i32
    %c0_i32_1 = arith.constant 0 : i32
    return %arg0, %c0_i32, %c0_i32_0 : i32, i32, i32
  }
  func.func @transform_1(%arg0: i32) -> (i32, i32) {
    %c0_i32 = arith.constant 0 : i32
    %c0_i32_0 = arith.constant 0 : i32
    %c0_i32_1 = arith.constant 0 : i32
    return %c0_i32, %c0_i32_0 : i32, i32
  }
  func.func @transform_2(%arg0: i32) -> (i32, i32, i32) {
    %c0_i32 = arith.constant 0 : i32
    %c0_i32_0 = arith.constant 0 : i32
    %c0_i32_1 = arith.constant 0 : i32
    return %arg0, %c0_i32, %c0_i32_0 : i32, i32, i32
  }
}

</mosaic_0001>

<llo_original>
// kernel: tpu_custom_call.1
$region0: #{tpu_custom_call.1}
  #allocation0 [shape = 'u32[]', space=smem, size = 0x4, offset = 0x4, fixed_abs, tag = 'smem constant byte address 0x4 - core index']
  #allocation1 [shape = 'u32[144,128]{1,0:T(1,128)}', space=vmem, size = 0x12000, scoped, tag = 'internal scratch']
  #allocation2 [shape = 'bf16[72,384]{1,0:T(8,128)(2,1)}', space=vmem, size = 0xd800, scoped, tag = 'scratch operand']
  %s0 = inlined_call_operand.hbm [shape: bf16[2,8,512], index: 0, kind: input, shape index: {}]
  %s1 = inlined_call_operand.hbm [shape: bf16[8,72], index: 1, kind: input, shape index: {}]
  %s2 = inlined_call_operand.hbm [shape: f32[2,8,384], index: 2, kind: output, shape index: {}]
  %s3 = sld [smem:[#allocation0]]
  $region49: #{tpu_custom_call.1} parent=0
    _
  %s5 = ssub.s32 1, %s3
  %s6 = scalar_select 0, %s5, %s3
  $region1: #{tpu_custom_call.1} parent=0
    #allocation3 [shape = 'u8[16384]{0}', space=vmem, size = 0x4000, scoped, tag = 'input window, operand 0']
    #allocation4 [shape = 's32[2]{0}', space=sflag, size = 0x8, scoped, tag = 'scoped memory for tpu_custom_call.1']
    #allocation5 [shape = 's32[2]{0}', space=sflag, size = 0x8, scoped, tag = 'scoped memory for tpu_custom_call.1']
    #allocation6 [shape = 'u8[2048]{0}', space=vmem, size = 0x800, scoped, tag = 'input window, operand 1, single buffered']
    #allocation7 [shape = 's32[1]{0}', space=sflag, size = 0x4, scoped, tag = 'scoped memory for tpu_custom_call.1']
    #allocation8 [shape = 'u8[24576]{0}', space=vmem, size = 0x6000, scoped, tag = 'output window, operand 0']
    %7 = vsyncpa [#allocation4], 0
    %s8 = scalar_lea.sflag [#allocation4], 1
    %9 = vsyncpa %s8, 0
    %10 = vsyncpa [#allocation7], 0
    %11 = vsyncpa [#allocation5], 0
    %s12 = scalar_lea.sflag [#allocation5], 1
    %13 = vsyncpa %s12, 0
    loop: start=0, step=1, limit=4
    $region2: #{tpu_custom_call.1} parent=1 // loop_pre_header
      _
    $region3: #{tpu_custom_call.1} parent=1 // loop_header
      %s15 = sphi 0, %s19
      %p16 = scmp.ge.s32.totalorder %s15, 4
      %s25 = sphi 0, %s27
      %s28 = sphi 0, %s25
      %s29 = sphi 0, %s28
      %s45 = sphi 0, %s29
      %s49 = sphi 0, %s49
      %s51 = sphi 0, %s49
      %s52 = sphi 0, %s51
      %s66 = sphi 0, %s52
      %s72 = sphi 0, %s74
      %s75 = sphi 0, %s72
      %s76 = sphi 0, %s75
      %s92 = sphi 0, %s76
    $region4: #{tpu_custom_call.1} parent=1 // loop_header_branch
      %18 = sbr.rel (%p16) target = $region8
    $region5: #{tpu_custom_call.1} parent=1 // loop_body
      %s20 = ssub.s32 %s15, 1
      %s21 = ssub.s32 %s15, 2
      %s22 = sadd.s32 %s15, 1
      %s23 = ssub.s32 %s15, %s22
      %p24 = scmp.eq.s32.totalorder %s23, 0
      %s26 = sadd.s32 %s25, 1
      %s27 = scalar_select %p24, %s25, %s26
      %p30 = pneg %p24
      %p31 = scmp.eq.s32.totalorder %s15, 1
      %p32 = por %p30, %p31
      %p33 = scmp.ne.s32.totalorder %s25, %s28
      %p34 = scmp.eq.s32.totalorder %s15, 0
      %p35 = por %p33, %p34
      %p36 = scmp.ne.s32.totalorder %s25, %s28
      %p37 = scmp.eq.s32.totalorder %s20, 1
      %p38 = por %p36, %p37
      %p39 = scmp.ne.s32.totalorder %s28, %s29
      %p40 = scmp.eq.s32.totalorder %s20, 0
      %p41 = por %p39, %p40
      %p42 = scmp.ne.s32.totalorder %s28, %s29
      %p43 = scmp.eq.s32.totalorder %s21, 1
      %p44 = por %p42, %p43
      %p46 = scmp.ne.s32.totalorder %s29, %s45
      %p47 = scmp.eq.s32.totalorder %s21, 0
      %p48 = por %p46, %p47
      %s50 = sadd.s32 %s49, 1
      %p53 = scmp.eq.s32.totalorder %s15, 1
      %p54 = scmp.ne.s32.totalorder %s49, %s51
      %p55 = scmp.eq.s32.totalorder %s15, 0
      %p56 = por %p54, %p55
      %p57 = scmp.ne.s32.totalorder %s49, %s51
      %p58 = scmp.eq.s32.totalorder %s20, 1
      %p59 = por %p57, %p58
      %p60 = scmp.ne.s32.totalorder %s51, %s52
      %p61 = scmp.eq.s32.totalorder %s20, 0
      %p62 = por %p60, %p61
      %p63 = scmp.ne.s32.totalorder %s51, %s52
      %p64 = scmp.eq.s32.totalorder %s21, 1
      %p65 = por %p63, %p64
      %p67 = scmp.ne.s32.totalorder %s52, %s66
      %p68 = scmp.eq.s32.totalorder %s21, 0
      %p69 = por %p67, %p68
      %s70 = ssub.s32 %s15, %s22
      %p71 = scmp.eq.s32.totalorder %s70, 0
      %s73 = sadd.s32 %s72, 1
      %s74 = scalar_select %p71, %s72, %s73
      %p77 = pneg %p71
      %p78 = scmp.eq.s32.totalorder %s15, 1
      %p79 = por %p77, %p78
      %p80 = scmp.ne.s32.totalorder %s72, %s75
      %p81 = scmp.eq.s32.totalorder %s15, 0
      %p82 = por %p80, %p81
      %p83 = scmp.ne.s32.totalorder %s72, %s75
      %p84 = scmp.eq.s32.totalorder %s20, 1
      %p85 = por %p83, %p84
      %p86 = scmp.ne.s32.totalorder %s75, %s76
      %p87 = scmp.eq.s32.totalorder %s20, 0
      %p88 = por %p86, %p87
      %p89 = scmp.ne.s32.totalorder %s75, %s76
      %p90 = scmp.eq.s32.totalorder %s21, 1
      %p91 = por %p89, %p90
      %p93 = scmp.ne.s32.totalorder %s76, %s92
      %p94 = scmp.eq.s32.totalorder %s21, 0
      %p95 = por %p93, %p94
      %p96 = scmp.le.s32.totalorder 1, %s15
      %p97 = scmp.lt.s32.totalorder %s15, 3
      %p98 = pnand %p96, %p97
      %p99 = pneg %p98
      // Predicated region
      $region9: #{tpu_custom_call.1} parent=5 // pred_check
        _
      $region10: #{tpu_custom_call.1} parent=5 // pred_check_branch
        %101 = sbr.rel (%p98) target = $region12
      $region11: #{tpu_custom_call.1} parent=5 // pred_region
        %s102 = ssub.s32 %s15, 1
        // Predicated region
        $region13: #{tpu_custom_call.1} parent=11 // pred_check
          %p103 = pneg %p62
        $region14: #{tpu_custom_call.1} parent=11 // pred_check_branch
          %105 = sbr.rel (%p103) target = $region16
        $region15: #{tpu_custom_call.1} parent=11 // pred_region
          %s107 = ssub.s32 64, 64
          %108 = vsyncadd [#allocation7], %s107
          %s110 = sshll.u32 [#allocation6], 4
          %s111 = int_to_ptr.vmem [resolvable:$true] %s110
          %113 = dma.hbm_to_vmem [thread:$0]  %s1, 64, %s111, [#allocation7]
        $region16: #{tpu_custom_call.1} parent=11 // pred_fallthru
          _
      $region12: #{tpu_custom_call.1} parent=5 // pred_fallthru
        _
      %p114 = scmp.lt.s32.totalorder %s15, 2
      // Predicated region
      $region17: #{tpu_custom_call.1} parent=5 // pred_check
        %p115 = pneg %p114
      $region18: #{tpu_custom_call.1} parent=5 // pred_check_branch
        %117 = sbr.rel (%p115) target = $region20
      $region19: #{tpu_custom_call.1} parent=5 // pred_region
        // Predicated region
        $region21: #{tpu_custom_call.1} parent=19 // pred_check
          %p118 = pneg %p35
        $region22: #{tpu_custom_call.1} parent=19 // pred_check_branch
          %120 = sbr.rel (%p118) target = $region24
        $region23: #{tpu_custom_call.1} parent=19 // pred_region
          %s121 = sand.u32 %s25, 1
          %s122 = scalar_lea.sflag [#allocation4], %s121
          %s123 = sand.u32 %s25, 1
          %s124 = smul.addr %s123, 16
          %s125 = scalar_lea.vmem [#allocation3], %s124
          %s127 = ssub.s32 256, 256
          %128 = vsyncadd %s122, %s127
          %s129 = smul.addr %s15, 4
          %s130 = smul.addr %s129, 64
          %s131 = scalar_lea.hbm %s0, %s130
          %s133 = sshll.u32 %s125, 4
          %s134 = int_to_ptr.vmem [resolvable:$true] %s133
          %136 = dma.hbm_to_vmem [thread:$0]  %s131, 256, %s134, %s122
        $region24: #{tpu_custom_call.1} parent=19 // pred_fallthru
          _
      $region20: #{tpu_custom_call.1} parent=5 // pred_fallthru
        _
      %p137 = scmp.le.s32.totalorder 1, %s15
      %p138 = scmp.lt.s32.totalorder %s15, 3
      %p139 = pnand %p137, %p138
      %p140 = pneg %p139
      // Predicated region
      $region25: #{tpu_custom_call.1} parent=5 // pred_check
        _
      $region26: #{tpu_custom_call.1} parent=5 // pred_check_branch
        %142 = sbr.rel (%p139) target = $region28
      $region27: #{tpu_custom_call.1} parent=5 // pred_region
        %s143 = ssub.s32 %s15, 1
        %s144 = sand.u32 %s28, 1
        %s145 = scalar_lea.sflag [#allocation4], %s144
        %s146 = sand.u32 %s28, 1
        %s147 = smul.addr %s146, 16
        %s148 = scalar_lea.vmem [#allocation3], %s147
        // Predicated region
        $region29: #{tpu_custom_call.1} parent=27 // pred_check
          %p149 = pneg %p41
        $region30: #{tpu_custom_call.1} parent=27 // pred_check_branch
          %151 = sbr.rel (%p149) target = $region32
        $region31: #{tpu_custom_call.1} parent=27 // pred_region
          %152 = dma.done %s145, 256
        $region32: #{tpu_custom_call.1} parent=27 // pred_fallthru
          _
        // Predicated region
        $region33: #{tpu_custom_call.1} parent=27 // pred_check
          %p153 = pneg %p62
        $region34: #{tpu_custom_call.1} parent=27 // pred_check_branch
          %155 = sbr.rel (%p153) target = $region36
        $region35: #{tpu_custom_call.1} parent=27 // pred_region
          %156 = dma.done [#allocation7], 64
        $region36: #{tpu_custom_call.1} parent=27 // pred_fallthru
          _
        %s157 = sand.u32 %s28, 1
        %s158 = scalar_lea.sflag [#allocation4], %s157
        %s159 = sand.u32 %s28, 1
        %s160 = smul.addr %s159, 16
        %s161 = scalar_lea.vmem [#allocation3], %s160
        %p162 = pneg %p41
        %p163 = pneg %p38
        %p164 = pneg %p62
        %p165 = pneg %p59
        %p166 = pneg %p88
        %p167 = pneg %p85
        %s168 = sand.u32 %s75, 1
        %s169 = scalar_lea.sflag [#allocation5], %s168
        %s170 = sand.u32 %s75, 1
        %s171 = smul.addr %s170, 24
        %s172 = scalar_lea.vmem [#allocation8], %s171
        %v174 = vld [vmem:[%s148] sm:$0xff]
        %v175 = vld [vmem:[%s148 + $0x8] sm:$0xf]
        %176 = vst [vmem:[#allocation2] sm:$0xff] %v174
        %177 = vst [vmem:[#allocation2 + $0x8] sm:$0xf] %v175
        %v178 = vld [vmem:[%s148] sm:$0xff]
        %v179 = vld [vmem:[%s148 + $0x8] sm:$0xff]
        %182 = vrot.lane.b32.xlu0 %v178, 127
        %v183 = vpop.permute.xlu0 %182
        %184 = vrot.lane.b32.xlu0 %v179, 127
        %v185 = vpop.permute.xlu0 %184
        %v186 = vrot.slane %v183, 4
        %v187 = vrot.slane %v185, 4
        %vm188 = vcmask 1043456
        %v189 = vsel %vm188, %v186, %v187
        %vm190 = vcmask 1039360
        %v191 = vsel %vm190, %v183, %v189
        %v192 = vsel %vm190, %v185, %v187
        %195 = vst [vmem:[#allocation2 + $0xc] sm:$0xff] %v191
        %196 = vst [vmem:[#allocation2 + $0x14] sm:$0xf] %v192
        %v197 = vld [vmem:[%s148] sm:$0xff]
        %v198 = vld [vmem:[%s148 + $0x8] sm:$0xff]
        %201 = vrot.lane.b32.xlu0 %v197, 126
        %v202 = vpop.permute.xlu0 %201
        %203 = vrot.lane.b32.xlu0 %v198, 126
        %v204 = vpop.permute.xlu0 %203
        %v205 = vrot.slane %v202, 4
        %v206 = vrot.slane %v204, 4
        %v207 = vsel %vm188, %v205, %v206
        %vm208 = vcmask 1031168
        %v209 = vsel %vm208, %v202, %v207
        %v210 = vsel %vm208, %v204, %v206
        %213 = vst [vmem:[#allocation2 + $0x18] sm:$0xff] %v209
        %214 = vst [vmem:[#allocation2 + $0x20] sm:$0xf] %v210
        %v215 = vld [vmem:[%s148] sm:$0xff]
        %v216 = vld [vmem:[%s148 + $0x8] sm:$0xff]
        %219 = vrot.lane.b32.xlu0 %v215, 110
        %v220 = vpop.permute.xlu0 %219
        %221 = vrot.lane.b32.xlu0 %v216, 110
        %v222 = vpop.permute.xlu0 %221
        %v223 = vrot.slane %v220, 4
        %v224 = vrot.slane %v222, 4
        %v225 = vsel %vm188, %v223, %v224
        %vm226 = vcmask 900096
        %v227 = vsel %vm226, %v220, %v225
        %v228 = vsel %vm226, %v222, %v224
        %231 = vst [vmem:[#allocation2 + $0x24] sm:$0xff] %v227
        %232 = vst [vmem:[#allocation2 + $0x2c] sm:$0xf] %v228
        %v233 = vld [vmem:[%s148] sm:$0xff]
        %v234 = vld [vmem:[%s148 + $0x8] sm:$0xff]
        %237 = vrot.lane.b32.xlu0 %v233, 109
        %v238 = vpop.permute.xlu0 %237
        %239 = vrot.lane.b32.xlu0 %v234, 109
        %v240 = vpop.permute.xlu0 %239
        %v241 = vrot.slane %v238, 4
        %v242 = vrot.slane %v240, 4
        %v243 = vsel %vm188, %v241, %v242
        %vm244 = vcmask 891904
        %v245 = vsel %vm244, %v238, %v243
        %v246 = vsel %vm244, %v240, %v242
        %249 = vst [vmem:[#allocation2 + $0x30] sm:$0xff] %v245
        %250 = vst [vmem:[#allocation2 + $0x38] sm:$0xf] %v246
        %v251 = vld [vmem:[%s148] sm:$0xff]
        %v252 = vld [vmem:[%s148 + $0x8] sm:$0xff]
        %255 = vrot.lane.b32.xlu0 %v251, 108
        %v256 = vpop.permute.xlu0 %255
        %257 = vrot.lane.b32.xlu0 %v252, 108
        %v258 = vpop.permute.xlu0 %257
        %v259 = vrot.slane %v256, 4
        %v260 = vrot.slane %v258, 4
        %v261 = vsel %vm188, %v259, %v260
        %vm262 = vcmask 883712
        %v263 = vsel %vm262, %v256, %v261
        %v264 = vsel %vm262, %v258, %v260
        %267 = vst [vmem:[#allocation2 + $0x3c] sm:$0xff] %v263
        %268 = vst [vmem:[#allocation2 + $0x44] sm:$0xf] %v264
        %v269 = vld [vmem:[%s148] sm:$0xff]
        %v270 = vld [vmem:[%s148 + $0x8] sm:$0xff]
        %273 = vrot.lane.b32.xlu0 %v269, 92
        %v274 = vpop.permute.xlu0 %273
        %275 = vrot.lane.b32.xlu0 %v270, 92
        %v276 = vpop.permute.xlu0 %275
        %v277 = vrot.slane %v274, 4
        %v278 = vrot.slane %v276, 4
        %v279 = vsel %vm188, %v277, %v278
        %vm280 = vcmask 752640
        %v281 = vsel %vm280, %v274, %v279
        %v282 = vsel %vm280, %v276, %v278
        %285 = vst [vmem:[#allocation2 + $0x48] sm:$0xff] %v281
        %286 = vst [vmem:[#allocation2 + $0x50] sm:$0xf] %v282
        %v287 = vld [vmem:[%s148] sm:$0xff]
        %v288 = vld [vmem:[%s148 + $0x8] sm:$0xff]
        %291 = vrot.lane.b32.xlu0 %v287, 91
        %v292 = vpop.permute.xlu0 %291
        %293 = vrot.lane.b32.xlu0 %v288, 91
        %v294 = vpop.permute.xlu0 %293
        %v295 = vrot.slane %v292, 4
        %v296 = vrot.slane %v294, 4
        %v297 = vsel %vm188, %v295, %v296
        %vm298 = vcmask 744448
        %v299 = vsel %vm298, %v292, %v297
        %v300 = vsel %vm298, %v294, %v296
        %303 = vst [vmem:[#allocation2 + $0x54] sm:$0xff] %v299
        %304 = vst [vmem:[#allocation2 + $0x5c] sm:$0xf] %v300
        %v305 = vld [vmem:[%s148] sm:$0xff]
        %v306 = vld [vmem:[%s148 + $0x8] sm:$0xff]
        %309 = vrot.lane.b32.xlu0 %v305, 90
        %v310 = vpop.permute.xlu0 %309
        %311 = vrot.lane.b32.xlu0 %v306, 90
        %v312 = vpop.permute.xlu0 %311
        %v313 = vrot.slane %v310, 4
        %v314 = vrot.slane %v312, 4
        %v315 = vsel %vm188, %v313, %v314
        %vm316 = vcmask 736256
        %v317 = vsel %vm316, %v310, %v315
        %v318 = vsel %vm316, %v312, %v314
        %321 = vst [vmem:[#allocation2 + $0x60] sm:$0xff] %v317
        %322 = vst [vmem:[#allocation2 + $0x68] sm:$0xf] %v318
        %v323 = vld [vmem:[#allocation6] sm:$0xf]
        %v324 = vld [vmem:[#allocation2] sm:$0xff]
        %v325 = vld [vmem:[#allocation2 + $0x8] sm:$0xf]
        %v326 = vld [vmem:[#allocation2 + $0xc] sm:$0xff]
        %v327 = vld [vmem:[#allocation2 + $0x14] sm:$0xf]
        %v328 = vld [vmem:[#allocation2 + $0x18] sm:$0xff]
        %v329 = vld [vmem:[#allocation2 + $0x20] sm:$0xf]
        %v330 = vld [vmem:[#allocation2 + $0x24] sm:$0xff]
        %v331 = vld [vmem:[#allocation2 + $0x2c] sm:$0xf]
        %v332 = vld [vmem:[#allocation2 + $0x30] sm:$0xff]
        %v333 = vld [vmem:[#allocation2 + $0x38] sm:$0xf]
        %v334 = vld [vmem:[#allocation2 + $0x3c] sm:$0xff]
        %v335 = vld [vmem:[#allocation2 + $0x44] sm:$0xf]
        %v336 = vld [vmem:[#allocation2 + $0x48] sm:$0xff]
        %v337 = vld [vmem:[#allocation2 + $0x50] sm:$0xf]
        %v338 = vld [vmem:[#allocation2 + $0x54] sm:$0xff]
        %v339 = vld [vmem:[#allocation2 + $0x5c] sm:$0xf]
        %v340 = vld [vmem:[#allocation2 + $0x60] sm:$0xff]
        %v341 = vld [vmem:[#allocation2 + $0x68] sm:$0xf]
        %v360 = vunpack.c.l.b16 %v324
        %v361 = vunpack.c.h.b16 %v324
        %v362 = vunpack.c.l.b16 %v325
        %v363 = vunpack.c.l.b16 %v326
        %v364 = vunpack.c.h.b16 %v326
        %v365 = vunpack.c.l.b16 %v327
        %v366 = vunpack.c.l.b16 %v328
        %v367 = vunpack.c.h.b16 %v328
        %v368 = vunpack.c.l.b16 %v329
        %v369 = vunpack.c.l.b16 %v330
        %v370 = vunpack.c.h.b16 %v330
        %v371 = vunpack.c.l.b16 %v331
        %v372 = vunpack.c.l.b16 %v332
        %v373 = vunpack.c.h.b16 %v332
        %v374 = vunpack.c.l.b16 %v333
        %v375 = vunpack.c.l.b16 %v334
        %v376 = vunpack.c.h.b16 %v334
        %v377 = vunpack.c.l.b16 %v335
        %v378 = vunpack.c.l.b16 %v336
        %v379 = vunpack.c.h.b16 %v336
        %v380 = vunpack.c.l.b16 %v337
        %v381 = vunpack.c.l.b16 %v338
        %v382 = vunpack.c.h.b16 %v338
        %v383 = vunpack.c.l.b16 %v339
        %v384 = vunpack.c.l.b16 %v340
        %v385 = vunpack.c.h.b16 %v340
        %v386 = vunpack.c.l.b16 %v341
        %v387 = vpack.c.b16 %v363, %v360
        %v388 = vpack.c.b16 %v364, %v361
        %v389 = vpack.c.b16 %v365, %v362
        %v390 = vpack.c.b16 %v369, %v366
        %v391 = vpack.c.b16 %v370, %v367
        %v392 = vpack.c.b16 %v371, %v368
        %v393 = vpack.c.b16 %v375, %v372
        %v394 = vpack.c.b16 %v376, %v373
        %v395 = vpack.c.b16 %v377, %v374
        %v396 = vpack.c.b16 %v381, %v378
        %v397 = vpack.c.b16 %v382, %v379
        %v398 = vpack.c.b16 %v383, %v380
        %v399 = vpack.c.b16 %v384, %v384
        %v400 = vpack.c.b16 %v385, %v385
        %v401 = vpack.c.b16 %v386, %v386
        %vm414 = vcmask 588800
        %v416 = vsel %vm414, %v323, 0
        %vm418 = vcmask 1043456
        %v420 = vsel %vm418, %v399, 0
        %v423 = vsel %vm418, %v400, 0
        %v426 = vsel %vm418, %v401, 0
        %428 = vmatprep.subr.bf16.mxu0 %v388
        %429 = vmatpush1.bf16.msra.mxu0 %v387
        %430 = vmatprep.subr.bf16.mxu0 %v391
        %431 = vmatpush1.bf16.msra.mxu0 %v390
        %432 = vmatprep.subr.bf16.mxu0 %v394
        %433 = vmatpush1.bf16.msra.mxu0 %v393
        %434 = vmatprep.subr.bf16.mxu0 %v397
        %435 = vmatpush1.bf16.msra.mxu0 %v396
        %436 = vmatprep.subr.bf16.mxu0 %v423
        %437 = vmatpush1.bf16.msra.mxu0 %v420
        %438 = vmatprep.subr.bf16.mxu0 0
        %439 = vmatpush1.bf16.msra.mxu0 0
        %440 = vmatprep.subr.bf16.mxu0 0
        %441 = vmatpush1.bf16.msra.mxu0 0
        %442 = vmatprep.subr.bf16.mxu0 0
        %443 = vmatpush1.bf16.msra.mxu0 0
        %444 = vmatprep.subr.bf16.mxu0 0
        %445 = vmatpush1.bf16.msra.mxu0 0
        %446 = vmatprep.subr.bf16.mxu0 0
        %447 = vmatpush1.bf16.msra.mxu0 0
        %448 = vmatprep.subr.bf16.mxu0 0
        %449 = vmatpush1.bf16.msra.mxu0 0
        %450 = vmatprep.subr.bf16.mxu0 0
        %451 = vmatpush1.bf16.msra.mxu0 0
        %452 = vmatprep.subr.bf16.mxu0 0
        %453 = vmatpush1.bf16.msra.mxu0 0
        %454 = vmatprep.subr.bf16.mxu0 0
        %455 = vmatpush1.bf16.msra.mxu0 0
        %456 = vmatprep.subr.bf16.mxu0 0
        %457 = vmatpush1.bf16.msra.mxu0 0
        %458 = vmatprep.subr.bf16.mxu0 0
        %459 = vmatpush1.bf16.msra.mxu0 0
        %460 = vmatprep.mubr.bf16.mxu0 0
        %461 = vmatmul.mubr.bf16.gmra.mrb[0].mxu0 %v416
        %v462 = vpop.f32.mrb[0].mxu0
        %v463 = vadd.f32 0.0, %v462
        %v464 = vpop.f32.mrb[0].mxu0
        %v465 = vadd.f32 0.0, %v464
        %v466 = vpop.f32.mrb[0].mxu0
        %v467 = vpop.f32.mrb[0].mxu0
        %468 = vdwg.mxu0
        %469 = vmatprep.subr.bf16.mxu0 0
        %470 = vmatpush1.bf16.msra.mxu0 %v389
        %471 = vmatprep.subr.bf16.mxu0 0
        %472 = vmatpush1.bf16.msra.mxu0 %v392
        %473 = vmatprep.subr.bf16.mxu0 0
        %474 = vmatpush1.bf16.msra.mxu0 %v395
        %475 = vmatprep.subr.bf16.mxu0 0
        %476 = vmatpush1.bf16.msra.mxu0 %v398
        %477 = vmatprep.subr.bf16.mxu0 0
        %478 = vmatpush1.bf16.msra.mxu0 %v426
        %479 = vmatprep.subr.bf16.mxu0 0
        %480 = vmatpush1.bf16.msra.mxu0 0
        %481 = vmatprep.subr.bf16.mxu0 0
        %482 = vmatpush1.bf16.msra.mxu0 0
        %483 = vmatprep.subr.bf16.mxu0 0
        %484 = vmatpush1.bf16.msra.mxu0 0
        %485 = vmatprep.subr.bf16.mxu0 0
        %486 = vmatpush1.bf16.msra.mxu0 0
        %487 = vmatprep.subr.bf16.mxu0 0
        %488 = vmatpush1.bf16.msra.mxu0 0
        %489 = vmatprep.subr.bf16.mxu0 0
        %490 = vmatpush1.bf16.msra.mxu0 0
        %491 = vmatprep.subr.bf16.mxu0 0
        %492 = vmatpush1.bf16.msra.mxu0 0
        %493 = vmatprep.subr.bf16.mxu0 0
        %494 = vmatpush1.bf16.msra.mxu0 0
        %495 = vmatprep.subr.bf16.mxu0 0
        %496 = vmatpush1.bf16.msra.mxu0 0
        %497 = vmatprep.subr.bf16.mxu0 0
        %498 = vmatpush1.bf16.msra.mxu0 0
        %499 = vmatprep.subr.bf16.mxu0 0
        %500 = vmatpush1.bf16.msra.mxu0 0
        %501 = vmatprep.mubr.bf16.mxu0 0
        %502 = vmatmul.mubr.bf16.gmra.mrb[0].mxu0 %v416
        %v503 = vpop.f32.mrb[0].mxu0
        %v504 = vadd.f32 0.0, %v503
        %v505 = vpop.f32.mrb[0].mxu0
        %v506 = vpop.f32.mrb[0].mxu0
        %v507 = vpop.f32.mrb[0].mxu0
        %508 = vdwg.mxu0
        %509 = vst [vmem:[%s172] sm:$0xff] %v463
        %510 = vst [vmem:[%s172 + $0x8] sm:$0xff] %v465
        %511 = vst [vmem:[%s172 + $0x10] sm:$0xff] %v504
        %s512 = sand.u32 %s75, 1
        %s513 = scalar_lea.sflag [#allocation5], %s512
        %s514 = sand.u32 %s75, 1
        %s515 = smul.addr %s514, 24
        %s516 = scalar_lea.vmem [#allocation8], %s515
        // Predicated region
        $region37: #{tpu_custom_call.1} parent=27 // pred_check
          %p517 = pneg %p85
        $region38: #{tpu_custom_call.1} parent=27 // pred_check_branch
          %519 = sbr.rel (%p517) target = $region40
        $region39: #{tpu_custom_call.1} parent=27 // pred_region
          %s521 = ssub.s32 384, 384
          %522 = vsyncadd %s513, %s521
          %s523 = smul.addr %s20, 3
          %s524 = smul.addr %s523, 128
          %s525 = scalar_lea.hbm %s2, %s524
          %s527 = sshll.u32 %s516, 4
          %s528 = int_to_ptr.vmem [resolvable:$true] %s527
          %530 = dma.vmem_to_hbm [thread:$0]  %s528, 384, %s525, %s513
        $region40: #{tpu_custom_call.1} parent=27 // pred_fallthru
          _
      $region28: #{tpu_custom_call.1} parent=5 // pred_fallthru
        _
      %p531 = scmp.le.s32.totalorder 2, %s15
      // Predicated region
      $region41: #{tpu_custom_call.1} parent=5 // pred_check
        %p532 = pneg %p531
      $region42: #{tpu_custom_call.1} parent=5 // pred_check_branch
        %534 = sbr.rel (%p532) target = $region44
      $region43: #{tpu_custom_call.1} parent=5 // pred_region
        %s535 = ssub.s32 %s15, 2
        // Predicated region
        $region45: #{tpu_custom_call.1} parent=43 // pred_check
          %p536 = pneg %p91
        $region46: #{tpu_custom_call.1} parent=43 // pred_check_branch
          %538 = sbr.rel (%p536) target = $region48
        $region47: #{tpu_custom_call.1} parent=43 // pred_region
          %s539 = sand.u32 %s76, 1
          %s540 = scalar_lea.sflag [#allocation5], %s539
          %s541 = sand.u32 %s76, 1
          %s542 = smul.addr %s541, 24
          %s543 = scalar_lea.vmem [#allocation8], %s542
          %544 = dma.done %s540, 384
        $region48: #{tpu_custom_call.1} parent=43 // pred_fallthru
          _
      $region44: #{tpu_custom_call.1} parent=5 // pred_fallthru
        _
    $region6: #{tpu_custom_call.1} parent=1 // loop_footer
      %s19 = sadd.s32 1, %s15
    $region7: #{tpu_custom_call.1} parent=1 // loop_footer_branch
      %14 = sbr.rel target = $region3
    $region8: #{tpu_custom_call.1} parent=1 // loop_exit
      _
    %545 = vsyncpa [#allocation4], 1
    %s546 = scalar_lea.sflag [#allocation4], 1
    %547 = vsyncpa %s546, 1
    %548 = vsyncpa [#allocation7], 1
    %549 = vsyncpa [#allocation5], 1
    %s550 = scalar_lea.sflag [#allocation5], 1
    %551 = vsyncpa %s550, 1

</llo_original>
